<compile_context>
chip_gen: v6e
topology: v6e:2x2x1
jax: 0.10.0
libtpu: 0.0.40
codegen_flags: <defaults>
</compile_context>

<pallas_src>
import math

import jax
import jax.numpy as jnp
from jax.experimental import pallas as pl
from jax.experimental.pallas import tpu as pltpu

_POINTWISE_BF16 = False  # bf16 MXU cast: enable for large C*TW, loosen tolerance


def _rowfold(d, p, a):
    # d: (3, 3, C) indexed [dh, dv, c]; fold the H taps of the nearest-x2
    # upsample for output-row parity p, fold index a in {0, 1}.
    if (p, a) == (0, 0):
        return d[0]
    if (p, a) == (0, 1):
        return d[1] + d[2]
    if (p, a) == (1, 0):
        return d[0] + d[1]
    return d[2]


def _colfold(m, q, b):
    # m: (3, C) indexed [dv, c]; same fold for the W direction.
    if (q, b) == (0, 0):
        return m[0]
    if (q, b) == (0, 1):
        return m[1] + m[2]
    if (q, b) == (1, 0):
        return m[0] + m[1]
    return m[2]


def _const_spec(shape):
    """BlockSpec for a grid-invariant operand; single-buffered when supported."""
    n = len(shape)

    def index_map(b):
        return (0,) * n

    if hasattr(pl, "Buffered"):
        try:
            return pl.BlockSpec(shape, index_map, pipeline_mode=pl.Buffered(1))
        except TypeError:
            pass
    return pl.BlockSpec(shape, index_map)


def eucb_forward(x_nchw, dw_weight, bn_gamma, bn_beta, bn_mean, bn_var,
                 pw_weight, pw_bias, *, eps=1e-5):
    """x_nchw: (B, C, H, W) float32. Returns (B, Cout, 2H, 2W) float32."""
    B, C, H, W = x_nchw.shape
    Cout = pw_weight.shape[0]
    CW = C * W

    # Pointwise W-tile width: keeps the scatter weight G at O(C*Cout*TW^2),
    # independent of W (reviewer item: no W^2-scaling weight).
    cap = max(1, 256 // (2 * C))
    TW = W if W <= cap else math.gcd(W, cap)
    NW = W // TW

    # ---------------- parameter folding (cheap, plain JAX) ----------------
    bn_scale = bn_gamma / jnp.sqrt(bn_var + eps)            # (C,)
    bn_bias = bn_beta - bn_mean * bn_scale                  # (C,)
    d = jnp.transpose(dw_weight[:, 0, :, :], (1, 2, 0)) * bn_scale[None, None, :]  # (3,3,C)

    # Per-tap lane weights in the channel-banded layout (lane = c*W + j).
    # The W-halo boundary mask is baked into the weights so the lane-shifted
    # window copies never need masking in-kernel.
    jlane = jnp.arange(CW) % W
    edge = {
        -1: (jlane != 0).astype(jnp.float32),
        0: jnp.ones((CW,), jnp.float32),
        1: (jlane != (W - 1)).astype(jnp.float32),
    }
    rows = []
    for p in range(2):
        for q in range(2):
            for a in range(2):
                for b in range(2):
                    wv = _colfold(_rowfold(d, p, a), q, b)  # (C,)
                    s = q + b - 1
                    rows.append(jnp.repeat(wv, W) * edge[s])
    wflat = jnp.stack(rows, axis=0)                         # (16, C*W)

    bnb = jnp.repeat(bn_bias, W)[None, :]                   # (1, C*W)

    # channel_shuffle(groups=C): channels_per_group == 1 -> identity permutation.
    pw = pw_weight[:, :, 0, 0].astype(jnp.float32)          # (Cout, C)

    # Scatter matmul weight: rows ordered (q, c, jj), columns (co, j', q');
    # its column order performs the 2j+q interleave so the output lands in an
    # NCHW-compatible lane layout.
    g = jnp.einsum('oc,jk,qr->qcjokr', pw,
                   jnp.eye(TW, dtype=jnp.float32),
                   jnp.eye(2, dtype=jnp.float32)).reshape(2 * C * TW, Cout * 2 * TW)
    pwb = jnp.repeat(pw_bias, 2 * TW)[None, :]              # (1, Cout*2*TW)

    # ------------------------------ kernel ---------------------------------
    def kernel(x_ref, w_ref, bnb_ref, g_ref, pwb_ref, o_ref):
        # Channel-banded, H-padded low-res buffer: (H+2, C*W), lane = c*W + j.
        # (For large C one would pick a different internal layout; here C is
        #  tiny so the per-channel band concat is a handful of VMEM copies.)
        xb0 = jnp.concatenate([x_ref[0, c] for c in range(C)], axis=-1)   # (H, CW)
        zrow = jnp.zeros((1, CW), jnp.float32)
        xb = jnp.concatenate([zrow, xb0, zrow], axis=0)                   # (H+2, CW)

        # 3 full-height window sources (feedback: 3 lane-shifted copies, not 9).
        zcol = jnp.zeros((H + 2, 1), jnp.float32)
        s_neg = jnp.concatenate([zcol, xb[:, :CW - 1]], axis=1)   # lane l -> xb[l-1]
        s_pos = jnp.concatenate([xb[:, 1:], zcol], axis=1)        # lane l -> xb[l+1]
        shifted = (s_neg, xb, s_pos)                               # index by s+1

        # Pre-broadcast constants once (no per-tap broadcast_in_dim).
        wbig = jnp.broadcast_to(w_ref[...][:, None, :], (16, H, CW))
        bnb_b = jnp.broadcast_to(bnb_ref[...], (H, CW))
        pwb_b = jnp.broadcast_to(pwb_ref[...], (H, Cout * 2 * TW))
        gmat = g_ref[...]
        if _POINTWISE_BF16:
            gmat = gmat.astype(jnp.bfloat16)

        for p in range(2):
            # depthwise (upsample + BN folded) + ReLU, per column parity q
            y = []
            for q in range(2):
                acc = None
                for a in range(2):
                    for b in range(2):
                        k = ((p * 2 + q) * 2 + a) * 2 + b
                        s = q + b - 1
                        win = shifted[s + 1][p + a:p + a + H, :]  # (H, CW)
                        term = win * wbig[k]
                        acc = term if acc is None else acc + term
                y.append(jnp.maximum(acc + bnb_b, 0.0))

            # pointwise + q interleave via the scatter matmul, W-tiled.
            for t in range(NW):
                parts = []
                for q in range(2):
                    for c in range(C):
                        lo = c * W + t * TW
                        parts.append(y[q][:, lo:lo + TW])
                lhs = jnp.concatenate(parts, axis=-1)             # (H, 2*C*TW)
                if _POINTWISE_BF16:
                    lhs = lhs.astype(jnp.bfloat16)
                out_pt = jnp.dot(lhs, gmat,
                                 preferred_element_type=jnp.float32) + pwb_b
                base = p * 2 * W + 2 * t * TW
                for co in range(Cout):
                    o_ref[0, co, :, base:base + 2 * TW] = (
                        out_pt[:, co * 2 * TW:(co + 1) * 2 * TW])

    out_flat = pl.pallas_call(
        kernel,
        out_shape=jax.ShapeDtypeStruct((B, Cout, H, 4 * W), jnp.float32),
        grid_spec=pltpu.PrefetchScalarGridSpec(
            num_scalar_prefetch=0,
            grid=(B,),
            in_specs=[
                pl.BlockSpec((1, C, H, W), lambda b: (b, 0, 0, 0)),
                _const_spec((16, CW)),
                _const_spec((1, CW)),
                _const_spec((2 * C * TW, Cout * 2 * TW)),
                _const_spec((1, Cout * 2 * TW)),
            ],
            out_specs=pl.BlockSpec((1, Cout, H, 4 * W), lambda b: (b, 0, 0, 0)),
        ),
        compiler_params=pltpu.CompilerParams(
            dimension_semantics=("parallel",),
        ),
    )(x_nchw.astype(jnp.float32), wflat, bnb, g, pwb)

    # (B, Cout, H, 4W) with lane = p*2W + 2j + q  ==  (B, Cout, 2H, 2W) flat:
    # a pure, free reshape (no transpose, no extra HBM pass).
    return out_flat.reshape(B, Cout, 2 * H, 2 * W)


if __name__ == "__main__":
    B, Cin, Cout, H, W = 2, 4, 8, 16, 16

    key = jax.random.PRNGKey(0)
    k = jax.random.split(key, 8)
    x = jax.random.normal(k[0], (B, Cin, H, W), jnp.float32)

    # synthetic parameters (shapes follow the torch module)
    dw_weight = jax.random.normal(k[1], (Cin, 1, 3, 3), jnp.float32) * 0.2
    bn_gamma = 1.0 + 0.1 * jax.random.normal(k[2], (Cin,), jnp.float32)
    bn_beta = 0.1 * jax.random.normal(k[3], (Cin,), jnp.float32)
    bn_mean = 0.05 * jax.random.normal(k[4], (Cin,), jnp.float32)
    bn_var = jnp.abs(1.0 + 0.1 * jax.random.normal(k[5], (Cin,), jnp.float32))
    pw_weight = jax.random.normal(k[6], (Cout, Cin, 1, 1), jnp.float32) * 0.2
    pw_bias = 0.1 * jax.random.normal(k[7], (Cout,), jnp.float32)

    fwd = jax.jit(eucb_forward)
    out = fwd(x, dw_weight, bn_gamma, bn_beta, bn_mean, bn_var,
              pw_weight, pw_bias)
    jax.block_until_ready(out)
    assert out.shape == (B, Cout, 2 * H, 2 * W), out.shape

    # pure-JAX reference (same math via XLA convs)
    xu = jnp.repeat(jnp.repeat(x, 2, axis=2), 2, axis=3)
    dw_ref = jax.lax.conv_general_dilated(
        xu, dw_weight, (1, 1), ((1, 1), (1, 1)),
        dimension_numbers=("NCHW", "OIHW", "NCHW"), feature_group_count=Cin)
    scale = (bn_gamma / jnp.sqrt(bn_var + 1e-5)).reshape(1, Cin, 1, 1)
    bias = (bn_beta - bn_mean * bn_gamma / jnp.sqrt(bn_var + 1e-5)).reshape(1, Cin, 1, 1)
    act = jnp.maximum(dw_ref * scale + bias, 0.0)
    # channel_shuffle(groups=Cin) is identity (channels_per_group == 1)
    ref = jax.lax.conv_general_dilated(
        act, pw_weight, (1, 1), ((0, 0), (0, 0)),
        dimension_numbers=("NCHW", "OIHW", "NCHW")) + pw_bias.reshape(1, Cout, 1, 1)
    err = float(jnp.max(jnp.abs(out - ref)))
    assert jnp.allclose(out, ref, atol=1e-3, rtol=1e-3), err

    print("KERNEL_OK")
</pallas_src>

<mosaic_0001>
module attributes {stable_mosaic.version = 11 : i64} {
  func.func @kernel(%arg0: i32, %arg1: memref<1x4x16x16xf32, #tpu.memory_space<vmem>>, %arg2: memref<16x64xf32, #tpu.memory_space<vmem>>, %arg3: memref<1x64xf32, #tpu.memory_space<vmem>>, %arg4: memref<128x256xf32, #tpu.memory_space<vmem>>, %arg5: memref<1x256xf32, #tpu.memory_space<vmem>>, %arg6: memref<1x8x16x64xf32, #tpu.memory_space<vmem>>) attributes {dimension_semantics = [#tpu.dimension_semantics<parallel>], iteration_bounds = array<i64: 2>, scalar_prefetch = 0 : i64, scratch_operands = 0 : i64, tpu.core_type = #tpu.core_type<tc>, window_params = [{transform_indices = @transform_0, window_bounds = array<i64: 1, 4, 16, 16>}, {pipeline_mode = #tpu.pipeline_mode<synchronous>, transform_indices = @transform_1, window_bounds = array<i64: 16, 64>}, {pipeline_mode = #tpu.pipeline_mode<synchronous>, transform_indices = @transform_2, window_bounds = array<i64: 1, 64>}, {pipeline_mode = #tpu.pipeline_mode<synchronous>, transform_indices = @transform_3, window_bounds = array<i64: 128, 256>}, {pipeline_mode = #tpu.pipeline_mode<synchronous>, transform_indices = @transform_4, window_bounds = array<i64: 1, 256>}, {transform_indices = @transform_5, window_bounds = array<i64: 1, 8, 16, 64>}]} {
    %c0 = arith.constant 0 : index
    %c0_0 = arith.constant 0 : index
    %c0_1 = arith.constant 0 : index
    %c0_2 = arith.constant 0 : index
    %0 = vector.load %arg1[%c0, %c0_0, %c0_1, %c0_2] : memref<1x4x16x16xf32, #tpu.memory_space<vmem>>, vector<1x1x16x16xf32>
    %1 = vector.shape_cast %0 : vector<1x1x16x16xf32> to vector<16x16xf32>
    %c0_3 = arith.constant 0 : index
    %c1 = arith.constant 1 : index
    %c0_4 = arith.constant 0 : index
    %c0_5 = arith.constant 0 : index
    %2 = vector.load %arg1[%c0_3, %c1, %c0_4, %c0_5] : memref<1x4x16x16xf32, #tpu.memory_space<vmem>>, vector<1x1x16x16xf32>
    %3 = vector.shape_cast %2 : vector<1x1x16x16xf32> to vector<16x16xf32>
    %c0_6 = arith.constant 0 : index
    %c2 = arith.constant 2 : index
    %c0_7 = arith.constant 0 : index
    %c0_8 = arith.constant 0 : index
    %4 = vector.load %arg1[%c0_6, %c2, %c0_7, %c0_8] : memref<1x4x16x16xf32, #tpu.memory_space<vmem>>, vector<1x1x16x16xf32>
    %5 = vector.shape_cast %4 : vector<1x1x16x16xf32> to vector<16x16xf32>
    %c0_9 = arith.constant 0 : index
    %c3 = arith.constant 3 : index
    %c0_10 = arith.constant 0 : index
    %c0_11 = arith.constant 0 : index
    %6 = vector.load %arg1[%c0_9, %c3, %c0_10, %c0_11] : memref<1x4x16x16xf32, #tpu.memory_space<vmem>>, vector<1x1x16x16xf32>
    %7 = vector.shape_cast %6 : vector<1x1x16x16xf32> to vector<16x16xf32>
    %8 = tpu.concatenate %1, %3, %5, %7 in 1 : vector<16x16xf32>, vector<16x16xf32>, vector<16x16xf32>, vector<16x16xf32> -> vector<16x64xf32>
    %cst = arith.constant 0.000000e+00 : f32
    %9 = vector.broadcast %cst : f32 to vector<1x64xf32>
    %10 = tpu.concatenate %9, %8, %9 in 0 : vector<1x64xf32>, vector<16x64xf32>, vector<1x64xf32> -> vector<18x64xf32>
    %cst_12 = arith.constant 0.000000e+00 : f32
    %11 = vector.broadcast %cst_12 : f32 to vector<18x1xf32>
    %12 = vector.extract_strided_slice %10 {offsets = [0, 0], sizes = [18, 63], strides = [1, 1]} : vector<18x64xf32> to vector<18x63xf32>
    %13 = tpu.concatenate %11, %12 in 1 : vector<18x1xf32>, vector<18x63xf32> -> vector<18x64xf32>
    %14 = vector.extract_strided_slice %10 {offsets = [0, 1], sizes = [18, 63], strides = [1, 1]} : vector<18x64xf32> to vector<18x63xf32>
    %15 = tpu.concatenate %14, %11 in 1 : vector<18x63xf32>, vector<18x1xf32> -> vector<18x64xf32>
    %c0_13 = arith.constant 0 : index
    %c0_14 = arith.constant 0 : index
    %16 = vector.load %arg2[%c0_13, %c0_14] : memref<16x64xf32, #tpu.memory_space<vmem>>, vector<16x64xf32>
    %17 = vector.shape_cast %16 : vector<16x64xf32> to vector<16x1x64xf32>
    %18 = vector.shape_cast %17 : vector<16x1x64xf32> to vector<16x1x64xf32>
    %19 = vector.broadcast %18 : vector<16x1x64xf32> to vector<16x16x64xf32>
    %c0_15 = arith.constant 0 : index
    %c0_16 = arith.constant 0 : index
    %20 = vector.load %arg3[%c0_15, %c0_16] : memref<1x64xf32, #tpu.memory_space<vmem>>, vector<1x64xf32>
    %21 = vector.shape_cast %20 : vector<1x64xf32> to vector<1x64xf32>
    %22 = vector.broadcast %21 : vector<1x64xf32> to vector<16x64xf32>
    %c0_17 = arith.constant 0 : index
    %c0_18 = arith.constant 0 : index
    %23 = vector.load %arg5[%c0_17, %c0_18] : memref<1x256xf32, #tpu.memory_space<vmem>>, vector<1x256xf32>
    %24 = vector.shape_cast %23 : vector<1x256xf32> to vector<1x256xf32>
    %25 = vector.broadcast %24 : vector<1x256xf32> to vector<16x256xf32>
    %c0_19 = arith.constant 0 : index
    %c0_20 = arith.constant 0 : index
    %26 = vector.load %arg4[%c0_19, %c0_20] : memref<128x256xf32, #tpu.memory_space<vmem>>, vector<128x256xf32>
    %27 = vector.extract_strided_slice %13 {offsets = [0, 0], sizes = [16, 64], strides = [1, 1]} : vector<18x64xf32> to vector<16x64xf32>
    %28 = vector.extract_strided_slice %19 {offsets = [0, 0, 0], sizes = [1, 16, 64], strides = [1, 1, 1]} : vector<16x16x64xf32> to vector<1x16x64xf32>
    %29 = vector.shape_cast %28 : vector<1x16x64xf32> to vector<16x64xf32>
    %30 = arith.mulf %27, %29 : vector<16x64xf32>
    %31 = vector.extract_strided_slice %10 {offsets = [0, 0], sizes = [16, 64], strides = [1, 1]} : vector<18x64xf32> to vector<16x64xf32>
    %32 = vector.extract_strided_slice %19 {offsets = [1, 0, 0], sizes = [1, 16, 64], strides = [1, 1, 1]} : vector<16x16x64xf32> to vector<1x16x64xf32>
    %33 = vector.shape_cast %32 : vector<1x16x64xf32> to vector<16x64xf32>
    %34 = arith.mulf %31, %33 : vector<16x64xf32>
    %35 = arith.addf %30, %34 : vector<16x64xf32>
    %36 = vector.extract_strided_slice %13 {offsets = [1, 0], sizes = [16, 64], strides = [1, 1]} : vector<18x64xf32> to vector<16x64xf32>
    %37 = vector.extract_strided_slice %19 {offsets = [2, 0, 0], sizes = [1, 16, 64], strides = [1, 1, 1]} : vector<16x16x64xf32> to vector<1x16x64xf32>
    %38 = vector.shape_cast %37 : vector<1x16x64xf32> to vector<16x64xf32>
    %39 = arith.mulf %36, %38 : vector<16x64xf32>
    %40 = arith.addf %35, %39 : vector<16x64xf32>
    %41 = vector.extract_strided_slice %10 {offsets = [1, 0], sizes = [16, 64], strides = [1, 1]} : vector<18x64xf32> to vector<16x64xf32>
    %42 = vector.extract_strided_slice %19 {offsets = [3, 0, 0], sizes = [1, 16, 64], strides = [1, 1, 1]} : vector<16x16x64xf32> to vector<1x16x64xf32>
    %43 = vector.shape_cast %42 : vector<1x16x64xf32> to vector<16x64xf32>
    %44 = arith.mulf %41, %43 : vector<16x64xf32>
    %45 = arith.addf %40, %44 : vector<16x64xf32>
    %46 = arith.addf %45, %22 : vector<16x64xf32>
    %cst_21 = arith.constant 0.000000e+00 : f32
    %47 = vector.broadcast %cst_21 : f32 to vector<16x64xf32>
    %48 = arith.maximumf %46, %47 : vector<16x64xf32>
    %49 = vector.extract_strided_slice %10 {offsets = [0, 0], sizes = [16, 64], strides = [1, 1]} : vector<18x64xf32> to vector<16x64xf32>
    %50 = vector.extract_strided_slice %19 {offsets = [4, 0, 0], sizes = [1, 16, 64], strides = [1, 1, 1]} : vector<16x16x64xf32> to vector<1x16x64xf32>
    %51 = vector.shape_cast %50 : vector<1x16x64xf32> to vector<16x64xf32>
    %52 = arith.mulf %49, %51 : vector<16x64xf32>
    %53 = vector.extract_strided_slice %15 {offsets = [0, 0], sizes = [16, 64], strides = [1, 1]} : vector<18x64xf32> to vector<16x64xf32>
    %54 = vector.extract_strided_slice %19 {offsets = [5, 0, 0], sizes = [1, 16, 64], strides = [1, 1, 1]} : vector<16x16x64xf32> to vector<1x16x64xf32>
    %55 = vector.shape_cast %54 : vector<1x16x64xf32> to vector<16x64xf32>
    %56 = arith.mulf %53, %55 : vector<16x64xf32>
    %57 = arith.addf %52, %56 : vector<16x64xf32>
    %58 = vector.extract_strided_slice %10 {offsets = [1, 0], sizes = [16, 64], strides = [1, 1]} : vector<18x64xf32> to vector<16x64xf32>
    %59 = vector.extract_strided_slice %19 {offsets = [6, 0, 0], sizes = [1, 16, 64], strides = [1, 1, 1]} : vector<16x16x64xf32> to vector<1x16x64xf32>
    %60 = vector.shape_cast %59 : vector<1x16x64xf32> to vector<16x64xf32>
    %61 = arith.mulf %58, %60 : vector<16x64xf32>
    %62 = arith.addf %57, %61 : vector<16x64xf32>
    %63 = vector.extract_strided_slice %15 {offsets = [1, 0], sizes = [16, 64], strides = [1, 1]} : vector<18x64xf32> to vector<16x64xf32>
    %64 = vector.extract_strided_slice %19 {offsets = [7, 0, 0], sizes = [1, 16, 64], strides = [1, 1, 1]} : vector<16x16x64xf32> to vector<1x16x64xf32>
    %65 = vector.shape_cast %64 : vector<1x16x64xf32> to vector<16x64xf32>
    %66 = arith.mulf %63, %65 : vector<16x64xf32>
    %67 = arith.addf %62, %66 : vector<16x64xf32>
    %68 = arith.addf %67, %22 : vector<16x64xf32>
    %cst_22 = arith.constant 0.000000e+00 : f32
    %69 = vector.broadcast %cst_22 : f32 to vector<16x64xf32>
    %70 = arith.maximumf %68, %69 : vector<16x64xf32>
    %71 = vector.extract_strided_slice %48 {offsets = [0, 0], sizes = [16, 16], strides = [1, 1]} : vector<16x64xf32> to vector<16x16xf32>
    %72 = vector.extract_strided_slice %48 {offsets = [0, 16], sizes = [16, 16], strides = [1, 1]} : vector<16x64xf32> to vector<16x16xf32>
    %73 = vector.extract_strided_slice %48 {offsets = [0, 32], sizes = [16, 16], strides = [1, 1]} : vector<16x64xf32> to vector<16x16xf32>
    %74 = vector.extract_strided_slice %48 {offsets = [0, 48], sizes = [16, 16], strides = [1, 1]} : vector<16x64xf32> to vector<16x16xf32>
    %75 = vector.extract_strided_slice %70 {offsets = [0, 0], sizes = [16, 16], strides = [1, 1]} : vector<16x64xf32> to vector<16x16xf32>
    %76 = vector.extract_strided_slice %70 {offsets = [0, 16], sizes = [16, 16], strides = [1, 1]} : vector<16x64xf32> to vector<16x16xf32>
    %77 = vector.extract_strided_slice %70 {offsets = [0, 32], sizes = [16, 16], strides = [1, 1]} : vector<16x64xf32> to vector<16x16xf32>
    %78 = vector.extract_strided_slice %70 {offsets = [0, 48], sizes = [16, 16], strides = [1, 1]} : vector<16x64xf32> to vector<16x16xf32>
    %79 = tpu.concatenate %71, %72, %73, %74, %75, %76, %77, %78 in 1 : vector<16x16xf32>, vector<16x16xf32>, vector<16x16xf32>, vector<16x16xf32>, vector<16x16xf32>, vector<16x16xf32>, vector<16x16xf32>, vector<16x16xf32> -> vector<16x128xf32>
    %cst_23 = arith.constant dense<0.000000e+00> : vector<16x256xf32>
    %80 = tpu.matmul %79, %26, %cst_23 {dimension_numbers = #tpu.dot_dimension_numbers<[1], [0], [0], [1], [0, 0, 1, 1], [], []>} : vector<16x128xf32>, vector<128x256xf32>, vector<16x256xf32> -> vector<16x256xf32>
    %81 = arith.addf %80, %25 : vector<16x256xf32>
    %82 = vector.extract_strided_slice %81 {offsets = [0, 0], sizes = [16, 32], strides = [1, 1]} : vector<16x256xf32> to vector<16x32xf32>
    %c0_24 = arith.constant 0 : index
    %c0_25 = arith.constant 0 : index
    %c0_26 = arith.constant 0 : index
    %c0_27 = arith.constant 0 : index
    %83 = vector.load %arg6[%c0_24, %c0_25, %c0_26, %c0_27] : memref<1x8x16x64xf32, #tpu.memory_space<vmem>>, vector<1x1x16x32xf32>
    %84 = vector.shape_cast %83 : vector<1x1x16x32xf32> to vector<16x32xf32>
    %85 = vector.shape_cast %82 : vector<16x32xf32> to vector<1x1x16x32xf32>
    tpu.vector_store %arg6[%c0_24, %c0_25, %c0_26, %c0_27], %85 {strides = array<i32>} : memref<1x8x16x64xf32, #tpu.memory_space<vmem>>, vector<1x1x16x32xf32>,
    %86 = vector.extract_strided_slice %81 {offsets = [0, 32], sizes = [16, 32], strides = [1, 1]} : vector<16x256xf32> to vector<16x32xf32>
    %c0_28 = arith.constant 0 : index
    %c1_29 = arith.constant 1 : index
    %c0_30 = arith.constant 0 : index
    %c0_31 = arith.constant 0 : index
    %87 = vector.load %arg6[%c0_28, %c1_29, %c0_30, %c0_31] : memref<1x8x16x64xf32, #tpu.memory_space<vmem>>, vector<1x1x16x32xf32>
    %88 = vector.shape_cast %87 : vector<1x1x16x32xf32> to vector<16x32xf32>
    %89 = vector.shape_cast %86 : vector<16x32xf32> to vector<1x1x16x32xf32>
    tpu.vector_store %arg6[%c0_28, %c1_29, %c0_30, %c0_31], %89 {strides = array<i32>} : memref<1x8x16x64xf32, #tpu.memory_space<vmem>>, vector<1x1x16x32xf32>,
    %90 = vector.extract_strided_slice %81 {offsets = [0, 64], sizes = [16, 32], strides = [1, 1]} : vector<16x256xf32> to vector<16x32xf32>
    %c0_32 = arith.constant 0 : index
    %c2_33 = arith.constant 2 : index
    %c0_34 = arith.constant 0 : index
    %c0_35 = arith.constant 0 : index
    %91 = vector.load %arg6[%c0_32, %c2_33, %c0_34, %c0_35] : memref<1x8x16x64xf32, #tpu.memory_space<vmem>>, vector<1x1x16x32xf32>
    %92 = vector.shape_cast %91 : vector<1x1x16x32xf32> to vector<16x32xf32>
    %93 = vector.shape_cast %90 : vector<16x32xf32> to vector<1x1x16x32xf32>
    tpu.vector_store %arg6[%c0_32, %c2_33, %c0_34, %c0_35], %93 {strides = array<i32>} : memref<1x8x16x64xf32, #tpu.memory_space<vmem>>, vector<1x1x16x32xf32>,
    %94 = vector.extract_strided_slice %81 {offsets = [0, 96], sizes = [16, 32], strides = [1, 1]} : vector<16x256xf32> to vector<16x32xf32>
    %c0_36 = arith.constant 0 : index
    %c3_37 = arith.constant 3 : index
    %c0_38 = arith.constant 0 : index
    %c0_39 = arith.constant 0 : index
    %95 = vector.load %arg6[%c0_36, %c3_37, %c0_38, %c0_39] : memref<1x8x16x64xf32, #tpu.memory_space<vmem>>, vector<1x1x16x32xf32>
    %96 = vector.shape_cast %95 : vector<1x1x16x32xf32> to vector<16x32xf32>
    %97 = vector.shape_cast %94 : vector<16x32xf32> to vector<1x1x16x32xf32>
    tpu.vector_store %arg6[%c0_36, %c3_37, %c0_38, %c0_39], %97 {strides = array<i32>} : memref<1x8x16x64xf32, #tpu.memory_space<vmem>>, vector<1x1x16x32xf32>,
    %98 = vector.extract_strided_slice %81 {offsets = [0, 128], sizes = [16, 32], strides = [1, 1]} : vector<16x256xf32> to vector<16x32xf32>
    %c0_40 = arith.constant 0 : index
    %c4 = arith.constant 4 : index
    %c0_41 = arith.constant 0 : index
    %c0_42 = arith.constant 0 : index
    %99 = vector.load %arg6[%c0_40, %c4, %c0_41, %c0_42] : memref<1x8x16x64xf32, #tpu.memory_space<vmem>>, vector<1x1x16x32xf32>
    %100 = vector.shape_cast %99 : vector<1x1x16x32xf32> to vector<16x32xf32>
    %101 = vector.shape_cast %98 : vector<16x32xf32> to vector<1x1x16x32xf32>
    tpu.vector_store %arg6[%c0_40, %c4, %c0_41, %c0_42], %101 {strides = array<i32>} : memref<1x8x16x64xf32, #tpu.memory_space<vmem>>, vector<1x1x16x32xf32>,
    %102 = vector.extract_strided_slice %81 {offsets = [0, 160], sizes = [16, 32], strides = [1, 1]} : vector<16x256xf32> to vector<16x32xf32>
    %c0_43 = arith.constant 0 : index
    %c5 = arith.constant 5 : index
    %c0_44 = arith.constant 0 : index
    %c0_45 = arith.constant 0 : index
    %103 = vector.load %arg6[%c0_43, %c5, %c0_44, %c0_45] : memref<1x8x16x64xf32, #tpu.memory_space<vmem>>, vector<1x1x16x32xf32>
    %104 = vector.shape_cast %103 : vector<1x1x16x32xf32> to vector<16x32xf32>
    %105 = vector.shape_cast %102 : vector<16x32xf32> to vector<1x1x16x32xf32>
    tpu.vector_store %arg6[%c0_43, %c5, %c0_44, %c0_45], %105 {strides = array<i32>} : memref<1x8x16x64xf32, #tpu.memory_space<vmem>>, vector<1x1x16x32xf32>,
    %106 = vector.extract_strided_slice %81 {offsets = [0, 192], sizes = [16, 32], strides = [1, 1]} : vector<16x256xf32> to vector<16x32xf32>
    %c0_46 = arith.constant 0 : index
    %c6 = arith.constant 6 : index
    %c0_47 = arith.constant 0 : index
    %c0_48 = arith.constant 0 : index
    %107 = vector.load %arg6[%c0_46, %c6, %c0_47, %c0_48] : memref<1x8x16x64xf32, #tpu.memory_space<vmem>>, vector<1x1x16x32xf32>
    %108 = vector.shape_cast %107 : vector<1x1x16x32xf32> to vector<16x32xf32>
    %109 = vector.shape_cast %106 : vector<16x32xf32> to vector<1x1x16x32xf32>
    tpu.vector_store %arg6[%c0_46, %c6, %c0_47, %c0_48], %109 {strides = array<i32>} : memref<1x8x16x64xf32, #tpu.memory_space<vmem>>, vector<1x1x16x32xf32>,
    %110 = vector.extract_strided_slice %81 {offsets = [0, 224], sizes = [16, 32], strides = [1, 1]} : vector<16x256xf32> to vector<16x32xf32>
    %c0_49 = arith.constant 0 : index
    %c7 = arith.constant 7 : index
    %c0_50 = arith.constant 0 : index
    %c0_51 = arith.constant 0 : index
    %111 = vector.load %arg6[%c0_49, %c7, %c0_50, %c0_51] : memref<1x8x16x64xf32, #tpu.memory_space<vmem>>, vector<1x1x16x32xf32>
    %112 = vector.shape_cast %111 : vector<1x1x16x32xf32> to vector<16x32xf32>
    %113 = vector.shape_cast %110 : vector<16x32xf32> to vector<1x1x16x32xf32>
    tpu.vector_store %arg6[%c0_49, %c7, %c0_50, %c0_51], %113 {strides = array<i32>} : memref<1x8x16x64xf32, #tpu.memory_space<vmem>>, vector<1x1x16x32xf32>,
    %114 = vector.extract_strided_slice %13 {offsets = [1, 0], sizes = [16, 64], strides = [1, 1]} : vector<18x64xf32> to vector<16x64xf32>
    %115 = vector.extract_strided_slice %19 {offsets = [8, 0, 0], sizes = [1, 16, 64], strides = [1, 1, 1]} : vector<16x16x64xf32> to vector<1x16x64xf32>
    %116 = vector.shape_cast %115 : vector<1x16x64xf32> to vector<16x64xf32>
    %117 = arith.mulf %114, %116 : vector<16x64xf32>
    %118 = vector.extract_strided_slice %10 {offsets = [1, 0], sizes = [16, 64], strides = [1, 1]} : vector<18x64xf32> to vector<16x64xf32>
    %119 = vector.extract_strided_slice %19 {offsets = [9, 0, 0], sizes = [1, 16, 64], strides = [1, 1, 1]} : vector<16x16x64xf32> to vector<1x16x64xf32>
    %120 = vector.shape_cast %119 : vector<1x16x64xf32> to vector<16x64xf32>
    %121 = arith.mulf %118, %120 : vector<16x64xf32>
    %122 = arith.addf %117, %121 : vector<16x64xf32>
    %123 = vector.extract_strided_slice %13 {offsets = [2, 0], sizes = [16, 64], strides = [1, 1]} : vector<18x64xf32> to vector<16x64xf32>
    %124 = vector.extract_strided_slice %19 {offsets = [10, 0, 0], sizes = [1, 16, 64], strides = [1, 1, 1]} : vector<16x16x64xf32> to vector<1x16x64xf32>
    %125 = vector.shape_cast %124 : vector<1x16x64xf32> to vector<16x64xf32>
    %126 = arith.mulf %123, %125 : vector<16x64xf32>
    %127 = arith.addf %122, %126 : vector<16x64xf32>
    %128 = vector.extract_strided_slice %10 {offsets = [2, 0], sizes = [16, 64], strides = [1, 1]} : vector<18x64xf32> to vector<16x64xf32>
    %129 = vector.extract_strided_slice %19 {offsets = [11, 0, 0], sizes = [1, 16, 64], strides = [1, 1, 1]} : vector<16x16x64xf32> to vector<1x16x64xf32>
    %130 = vector.shape_cast %129 : vector<1x16x64xf32> to vector<16x64xf32>
    %131 = arith.mulf %128, %130 : vector<16x64xf32>
    %132 = arith.addf %127, %131 : vector<16x64xf32>
    %133 = arith.addf %132, %22 : vector<16x64xf32>
    %cst_52 = arith.constant 0.000000e+00 : f32
    %134 = vector.broadcast %cst_52 : f32 to vector<16x64xf32>
    %135 = arith.maximumf %133, %134 : vector<16x64xf32>
    %136 = vector.extract_strided_slice %10 {offsets = [1, 0], sizes = [16, 64], strides = [1, 1]} : vector<18x64xf32> to vector<16x64xf32>
    %137 = vector.extract_strided_slice %19 {offsets = [12, 0, 0], sizes = [1, 16, 64], strides = [1, 1, 1]} : vector<16x16x64xf32> to vector<1x16x64xf32>
    %138 = vector.shape_cast %137 : vector<1x16x64xf32> to vector<16x64xf32>
    %139 = arith.mulf %136, %138 : vector<16x64xf32>
    %140 = vector.extract_strided_slice %15 {offsets = [1, 0], sizes = [16, 64], strides = [1, 1]} : vector<18x64xf32> to vector<16x64xf32>
    %141 = vector.extract_strided_slice %19 {offsets = [13, 0, 0], sizes = [1, 16, 64], strides = [1, 1, 1]} : vector<16x16x64xf32> to vector<1x16x64xf32>
    %142 = vector.shape_cast %141 : vector<1x16x64xf32> to vector<16x64xf32>
    %143 = arith.mulf %140, %142 : vector<16x64xf32>
    %144 = arith.addf %139, %143 : vector<16x64xf32>
    %145 = vector.extract_strided_slice %10 {offsets = [2, 0], sizes = [16, 64], strides = [1, 1]} : vector<18x64xf32> to vector<16x64xf32>
    %146 = vector.extract_strided_slice %19 {offsets = [14, 0, 0], sizes = [1, 16, 64], strides = [1, 1, 1]} : vector<16x16x64xf32> to vector<1x16x64xf32>
    %147 = vector.shape_cast %146 : vector<1x16x64xf32> to vector<16x64xf32>
    %148 = arith.mulf %145, %147 : vector<16x64xf32>
    %149 = arith.addf %144, %148 : vector<16x64xf32>
    %150 = vector.extract_strided_slice %15 {offsets = [2, 0], sizes = [16, 64], strides = [1, 1]} : vector<18x64xf32> to vector<16x64xf32>
    %151 = vector.extract_strided_slice %19 {offsets = [15, 0, 0], sizes = [1, 16, 64], strides = [1, 1, 1]} : vector<16x16x64xf32> to vector<1x16x64xf32>
    %152 = vector.shape_cast %151 : vector<1x16x64xf32> to vector<16x64xf32>
    %153 = arith.mulf %150, %152 : vector<16x64xf32>
    %154 = arith.addf %149, %153 : vector<16x64xf32>
    %155 = arith.addf %154, %22 : vector<16x64xf32>
    %cst_53 = arith.constant 0.000000e+00 : f32
    %156 = vector.broadcast %cst_53 : f32 to vector<16x64xf32>
    %157 = arith.maximumf %155, %156 : vector<16x64xf32>
    %158 = vector.extract_strided_slice %135 {offsets = [0, 0], sizes = [16, 16], strides = [1, 1]} : vector<16x64xf32> to vector<16x16xf32>
    %159 = vector.extract_strided_slice %135 {offsets = [0, 16], sizes = [16, 16], strides = [1, 1]} : vector<16x64xf32> to vector<16x16xf32>
    %160 = vector.extract_strided_slice %135 {offsets = [0, 32], sizes = [16, 16], strides = [1, 1]} : vector<16x64xf32> to vector<16x16xf32>
    %161 = vector.extract_strided_slice %135 {offsets = [0, 48], sizes = [16, 16], strides = [1, 1]} : vector<16x64xf32> to vector<16x16xf32>
    %162 = vector.extract_strided_slice %157 {offsets = [0, 0], sizes = [16, 16], strides = [1, 1]} : vector<16x64xf32> to vector<16x16xf32>
    %163 = vector.extract_strided_slice %157 {offsets = [0, 16], sizes = [16, 16], strides = [1, 1]} : vector<16x64xf32> to vector<16x16xf32>
    %164 = vector.extract_strided_slice %157 {offsets = [0, 32], sizes = [16, 16], strides = [1, 1]} : vector<16x64xf32> to vector<16x16xf32>
    %165 = vector.extract_strided_slice %157 {offsets = [0, 48], sizes = [16, 16], strides = [1, 1]} : vector<16x64xf32> to vector<16x16xf32>
    %166 = tpu.concatenate %158, %159, %160, %161, %162, %163, %164, %165 in 1 : vector<16x16xf32>, vector<16x16xf32>, vector<16x16xf32>, vector<16x16xf32>, vector<16x16xf32>, vector<16x16xf32>, vector<16x16xf32>, vector<16x16xf32> -> vector<16x128xf32>
    %cst_54 = arith.constant dense<0.000000e+00> : vector<16x256xf32>
    %167 = tpu.matmul %166, %26, %cst_54 {dimension_numbers = #tpu.dot_dimension_numbers<[1], [0], [0], [1], [0, 0, 1, 1], [], []>} : vector<16x128xf32>, vector<128x256xf32>, vector<16x256xf32> -> vector<16x256xf32>
    %168 = arith.addf %167, %25 : vector<16x256xf32>
    %169 = vector.extract_strided_slice %168 {offsets = [0, 0], sizes = [16, 32], strides = [1, 1]} : vector<16x256xf32> to vector<16x32xf32>
    %c0_55 = arith.constant 0 : index
    %c0_56 = arith.constant 0 : index
    %c0_57 = arith.constant 0 : index
    %c32 = arith.constant 32 : index
    %170 = vector.load %arg6[%c0_55, %c0_56, %c0_57, %c32] : memref<1x8x16x64xf32, #tpu.memory_space<vmem>>, vector<1x1x16x32xf32>
    %171 = vector.shape_cast %170 : vector<1x1x16x32xf32> to vector<16x32xf32>
    %172 = vector.shape_cast %169 : vector<16x32xf32> to vector<1x1x16x32xf32>
    tpu.vector_store %arg6[%c0_55, %c0_56, %c0_57, %c32], %172 {strides = array<i32>} : memref<1x8x16x64xf32, #tpu.memory_space<vmem>>, vector<1x1x16x32xf32>,
    %173 = vector.extract_strided_slice %168 {offsets = [0, 32], sizes = [16, 32], strides = [1, 1]} : vector<16x256xf32> to vector<16x32xf32>
    %c0_58 = arith.constant 0 : index
    %c1_59 = arith.constant 1 : index
    %c0_60 = arith.constant 0 : index
    %c32_61 = arith.constant 32 : index
    %174 = vector.load %arg6[%c0_58, %c1_59, %c0_60, %c32_61] : memref<1x8x16x64xf32, #tpu.memory_space<vmem>>, vector<1x1x16x32xf32>
    %175 = vector.shape_cast %174 : vector<1x1x16x32xf32> to vector<16x32xf32>
    %176 = vector.shape_cast %173 : vector<16x32xf32> to vector<1x1x16x32xf32>
    tpu.vector_store %arg6[%c0_58, %c1_59, %c0_60, %c32_61], %176 {strides = array<i32>} : memref<1x8x16x64xf32, #tpu.memory_space<vmem>>, vector<1x1x16x32xf32>,
    %177 = vector.extract_strided_slice %168 {offsets = [0, 64], sizes = [16, 32], strides = [1, 1]} : vector<16x256xf32> to vector<16x32xf32>
    %c0_62 = arith.constant 0 : index
    %c2_63 = arith.constant 2 : index
    %c0_64 = arith.constant 0 : index
    %c32_65 = arith.constant 32 : index
    %178 = vector.load %arg6[%c0_62, %c2_63, %c0_64, %c32_65] : memref<1x8x16x64xf32, #tpu.memory_space<vmem>>, vector<1x1x16x32xf32>
    %179 = vector.shape_cast %178 : vector<1x1x16x32xf32> to vector<16x32xf32>
    %180 = vector.shape_cast %177 : vector<16x32xf32> to vector<1x1x16x32xf32>
    tpu.vector_store %arg6[%c0_62, %c2_63, %c0_64, %c32_65], %180 {strides = array<i32>} : memref<1x8x16x64xf32, #tpu.memory_space<vmem>>, vector<1x1x16x32xf32>,
    %181 = vector.extract_strided_slice %168 {offsets = [0, 96], sizes = [16, 32], strides = [1, 1]} : vector<16x256xf32> to vector<16x32xf32>
    %c0_66 = arith.constant 0 : index
    %c3_67 = arith.constant 3 : index
    %c0_68 = arith.constant 0 : index
    %c32_69 = arith.constant 32 : index
    %182 = vector.load %arg6[%c0_66, %c3_67, %c0_68, %c32_69] : memref<1x8x16x64xf32, #tpu.memory_space<vmem>>, vector<1x1x16x32xf32>
    %183 = vector.shape_cast %182 : vector<1x1x16x32xf32> to vector<16x32xf32>
    %184 = vector.shape_cast %181 : vector<16x32xf32> to vector<1x1x16x32xf32>
    tpu.vector_store %arg6[%c0_66, %c3_67, %c0_68, %c32_69], %184 {strides = array<i32>} : memref<1x8x16x64xf32, #tpu.memory_space<vmem>>, vector<1x1x16x32xf32>,
    %185 = vector.extract_strided_slice %168 {offsets = [0, 128], sizes = [16, 32], strides = [1, 1]} : vector<16x256xf32> to vector<16x32xf32>
    %c0_70 = arith.constant 0 : index
    %c4_71 = arith.constant 4 : index
    %c0_72 = arith.constant 0 : index
    %c32_73 = arith.constant 32 : index
    %186 = vector.load %arg6[%c0_70, %c4_71, %c0_72, %c32_73] : memref<1x8x16x64xf32, #tpu.memory_space<vmem>>, vector<1x1x16x32xf32>
    %187 = vector.shape_cast %186 : vector<1x1x16x32xf32> to vector<16x32xf32>
    %188 = vector.shape_cast %185 : vector<16x32xf32> to vector<1x1x16x32xf32>
    tpu.vector_store %arg6[%c0_70, %c4_71, %c0_72, %c32_73], %188 {strides = array<i32>} : memref<1x8x16x64xf32, #tpu.memory_space<vmem>>, vector<1x1x16x32xf32>,
    %189 = vector.extract_strided_slice %168 {offsets = [0, 160], sizes = [16, 32], strides = [1, 1]} : vector<16x256xf32> to vector<16x32xf32>
    %c0_74 = arith.constant 0 : index
    %c5_75 = arith.constant 5 : index
    %c0_76 = arith.constant 0 : index
    %c32_77 = arith.constant 32 : index
    %190 = vector.load %arg6[%c0_74, %c5_75, %c0_76, %c32_77] : memref<1x8x16x64xf32, #tpu.memory_space<vmem>>, vector<1x1x16x32xf32>
    %191 = vector.shape_cast %190 : vector<1x1x16x32xf32> to vector<16x32xf32>
    %192 = vector.shape_cast %189 : vector<16x32xf32> to vector<1x1x16x32xf32>
    tpu.vector_store %arg6[%c0_74, %c5_75, %c0_76, %c32_77], %192 {strides = array<i32>} : memref<1x8x16x64xf32, #tpu.memory_space<vmem>>, vector<1x1x16x32xf32>,
    %193 = vector.extract_strided_slice %168 {offsets = [0, 192], sizes = [16, 32], strides = [1, 1]} : vector<16x256xf32> to vector<16x32xf32>
    %c0_78 = arith.constant 0 : index
    %c6_79 = arith.constant 6 : index
    %c0_80 = arith.constant 0 : index
    %c32_81 = arith.constant 32 : index
    %194 = vector.load %arg6[%c0_78, %c6_79, %c0_80, %c32_81] : memref<1x8x16x64xf32, #tpu.memory_space<vmem>>, vector<1x1x16x32xf32>
    %195 = vector.shape_cast %194 : vector<1x1x16x32xf32> to vector<16x32xf32>
    %196 = vector.shape_cast %193 : vector<16x32xf32> to vector<1x1x16x32xf32>
    tpu.vector_store %arg6[%c0_78, %c6_79, %c0_80, %c32_81], %196 {strides = array<i32>} : memref<1x8x16x64xf32, #tpu.memory_space<vmem>>, vector<1x1x16x32xf32>,
    %197 = vector.extract_strided_slice %168 {offsets = [0, 224], sizes = [16, 32], strides = [1, 1]} : vector<16x256xf32> to vector<16x32xf32>
    %c0_82 = arith.constant 0 : index
    %c7_83 = arith.constant 7 : index
    %c0_84 = arith.constant 0 : index
    %c32_85 = arith.constant 32 : index
    %198 = vector.load %arg6[%c0_82, %c7_83, %c0_84, %c32_85] : memref<1x8x16x64xf32, #tpu.memory_space<vmem>>, vector<1x1x16x32xf32>
    %199 = vector.shape_cast %198 : vector<1x1x16x32xf32> to vector<16x32xf32>
    %200 = vector.shape_cast %197 : vector<16x32xf32> to vector<1x1x16x32xf32>
    tpu.vector_store %arg6[%c0_82, %c7_83, %c0_84, %c32_85], %200 {strides = array<i32>} : memref<1x8x16x64xf32, #tpu.memory_space<vmem>>, vector<1x1x16x32xf32>,
    return
  }
  func.func @transform_0(%arg0: i32) -> (i32, i32, i32, i32) {
    %c0_i32 = arith.constant 0 : i32
    %c0_i32_0 = arith.constant 0 : i32
    %c0_i32_1 = arith.constant 0 : i32
    %c0_i32_2 = arith.constant 0 : i32
    return %arg0, %c0_i32, %c0_i32_0, %c0_i32_1 : i32, i32, i32, i32
  }
  func.func @transform_1(%arg0: i32) -> (i32, i32) {
    %c0_i32 = arith.constant 0 : i32
    %c0_i32_0 = arith.constant 0 : i32
    %c0_i32_1 = arith.constant 0 : i32
    return %c0_i32, %c0_i32_0 : i32, i32
  }
  func.func @transform_2(%arg0: i32) -> (i32, i32) {
    %c0_i32 = arith.constant 0 : i32
    %c0_i32_0 = arith.constant 0 : i32
    %c0_i32_1 = arith.constant 0 : i32
    return %c0_i32, %c0_i32_0 : i32, i32
  }
  func.func @transform_3(%arg0: i32) -> (i32, i32) {
    %c0_i32 = arith.constant 0 : i32
    %c0_i32_0 = arith.constant 0 : i32
    %c0_i32_1 = arith.constant 0 : i32
    return %c0_i32, %c0_i32_0 : i32, i32
  }
  func.func @transform_4(%arg0: i32) -> (i32, i32) {
    %c0_i32 = arith.constant 0 : i32
    %c0_i32_0 = arith.constant 0 : i32
    %c0_i32_1 = arith.constant 0 : i32
    return %c0_i32, %c0_i32_0 : i32, i32
  }
  func.func @transform_5(%arg0: i32) -> (i32, i32, i32, i32) {
    %c0_i32 = arith.constant 0 : i32
    %c0_i32_0 = arith.constant 0 : i32
    %c0_i32_1 = arith.constant 0 : i32
    %c0_i32_2 = arith.constant 0 : i32
    return %arg0, %c0_i32, %c0_i32_0, %c0_i32_1 : i32, i32, i32, i32
  }
}

</mosaic_0001>

<llo_original>
// kernel: eucb_forward.1
$region0: #{eucb_forward.1}
  #allocation0 [shape = 'u32[]', space=smem, size = 0x4, offset = 0x4, fixed_abs, tag = 'smem constant byte address 0x4 - core index']
  #allocation1 [shape = 'u32[144,128]{1,0:T(1,128)}', space=vmem, size = 0x12000, scoped, tag = 'internal scratch']
  %s0 = inlined_call_operand.vmem [shape: f32[2,4,16,16], index: 0, kind: input, shape index: {}]
  %s1 = inlined_call_operand.vmem [shape: f32[16,64], index: 1, kind: input, shape index: {}]
  %s2 = inlined_call_operand.vmem [shape: f32[1,64], index: 2, kind: input, shape index: {}]
  %s3 = inlined_call_operand.vmem [shape: f32[128,256], index: 3, kind: input, shape index: {}]
  %s4 = inlined_call_operand.vmem [shape: f32[1,256], index: 4, kind: input, shape index: {}]
  %s5 = inlined_call_operand.vmem [shape: f32[2,8,16,64], index: 5, kind: output, shape index: {}]
  %s6 = sld [smem:[#allocation0]]
  $region53: #{eucb_forward.1} parent=0
    _
  %s8 = ssub.s32 1, %s6
  %s9 = scalar_select 0, %s8, %s6
  loop: start=0, step=1, limit=4
  $region2: #{eucb_forward.1} parent=0 // loop_pre_header
    _
  $region3: #{eucb_forward.1} parent=0 // loop_header
    %s11 = sphi 0, %s15
    %p12 = scmp.ge.s32.totalorder %s11, 4
    %s21 = sphi 0, %s23
    %s24 = sphi 0, %s21
    %s25 = sphi 0, %s24
    %s41 = sphi 0, %s25
    %s45 = sphi 0, %s45
    %s47 = sphi 0, %s45
    %s48 = sphi 0, %s47
    %s62 = sphi 0, %s48
    %s66 = sphi 0, %s66
    %s68 = sphi 0, %s66
    %s69 = sphi 0, %s68
    %s83 = sphi 0, %s69
    %s87 = sphi 0, %s87
    %s89 = sphi 0, %s87
    %s90 = sphi 0, %s89
    %s104 = sphi 0, %s90
    %s108 = sphi 0, %s108
    %s110 = sphi 0, %s108
    %s111 = sphi 0, %s110
    %s125 = sphi 0, %s111
    %s131 = sphi 0, %s133
    %s134 = sphi 0, %s131
    %s135 = sphi 0, %s134
    %s151 = sphi 0, %s135
  $region4: #{eucb_forward.1} parent=0 // loop_header_branch
    %14 = sbr.rel (%p12) target = $region8
  $region5: #{eucb_forward.1} parent=0 // loop_body
    %s16 = ssub.s32 %s11, 1
    %s17 = ssub.s32 %s11, 2
    %s18 = sadd.s32 %s11, 1
    %s19 = ssub.s32 %s11, %s18
    %p20 = scmp.eq.s32.totalorder %s19, 0
    %s22 = sadd.s32 %s21, 1
    %s23 = scalar_select %p20, %s21, %s22
    %p26 = pneg %p20
    %p27 = scmp.eq.s32.totalorder %s11, 1
    %p28 = por %p26, %p27
    %p29 = scmp.ne.s32.totalorder %s21, %s24
    %p30 = scmp.eq.s32.totalorder %s11, 0
    %p31 = por %p29, %p30
    %p32 = scmp.ne.s32.totalorder %s21, %s24
    %p33 = scmp.eq.s32.totalorder %s16, 1
    %p34 = por %p32, %p33
    %p35 = scmp.ne.s32.totalorder %s24, %s25
    %p36 = scmp.eq.s32.totalorder %s16, 0
    %p37 = por %p35, %p36
    %p38 = scmp.ne.s32.totalorder %s24, %s25
    %p39 = scmp.eq.s32.totalorder %s17, 1
    %p40 = por %p38, %p39
    %p42 = scmp.ne.s32.totalorder %s25, %s41
    %p43 = scmp.eq.s32.totalorder %s17, 0
    %p44 = por %p42, %p43
    %s46 = sadd.s32 %s45, 1
    %p49 = scmp.eq.s32.totalorder %s11, 1
    %p50 = scmp.ne.s32.totalorder %s45, %s47
    %p51 = scmp.eq.s32.totalorder %s11, 0
    %p52 = por %p50, %p51
    %p53 = scmp.ne.s32.totalorder %s45, %s47
    %p54 = scmp.eq.s32.totalorder %s16, 1
    %p55 = por %p53, %p54
    %p56 = scmp.ne.s32.totalorder %s47, %s48
    %p57 = scmp.eq.s32.totalorder %s16, 0
    %p58 = por %p56, %p57
    %p59 = scmp.ne.s32.totalorder %s47, %s48
    %p60 = scmp.eq.s32.totalorder %s17, 1
    %p61 = por %p59, %p60
    %p63 = scmp.ne.s32.totalorder %s48, %s62
    %p64 = scmp.eq.s32.totalorder %s17, 0
    %p65 = por %p63, %p64
    %s67 = sadd.s32 %s66, 1
    %p70 = scmp.eq.s32.totalorder %s11, 1
    %p71 = scmp.ne.s32.totalorder %s66, %s68
    %p72 = scmp.eq.s32.totalorder %s11, 0
    %p73 = por %p71, %p72
    %p74 = scmp.ne.s32.totalorder %s66, %s68
    %p75 = scmp.eq.s32.totalorder %s16, 1
    %p76 = por %p74, %p75
    %p77 = scmp.ne.s32.totalorder %s68, %s69
    %p78 = scmp.eq.s32.totalorder %s16, 0
    %p79 = por %p77, %p78
    %p80 = scmp.ne.s32.totalorder %s68, %s69
    %p81 = scmp.eq.s32.totalorder %s17, 1
    %p82 = por %p80, %p81
    %p84 = scmp.ne.s32.totalorder %s69, %s83
    %p85 = scmp.eq.s32.totalorder %s17, 0
    %p86 = por %p84, %p85
    %s88 = sadd.s32 %s87, 1
    %p91 = scmp.eq.s32.totalorder %s11, 1
    %p92 = scmp.ne.s32.totalorder %s87, %s89
    %p93 = scmp.eq.s32.totalorder %s11, 0
    %p94 = por %p92, %p93
    %p95 = scmp.ne.s32.totalorder %s87, %s89
    %p96 = scmp.eq.s32.totalorder %s16, 1
    %p97 = por %p95, %p96
    %p98 = scmp.ne.s32.totalorder %s89, %s90
    %p99 = scmp.eq.s32.totalorder %s16, 0
    %p100 = por %p98, %p99
    %p101 = scmp.ne.s32.totalorder %s89, %s90
    %p102 = scmp.eq.s32.totalorder %s17, 1
    %p103 = por %p101, %p102
    %p105 = scmp.ne.s32.totalorder %s90, %s104
    %p106 = scmp.eq.s32.totalorder %s17, 0
    %p107 = por %p105, %p106
    %s109 = sadd.s32 %s108, 1
    %p112 = scmp.eq.s32.totalorder %s11, 1
    %p113 = scmp.ne.s32.totalorder %s108, %s110
    %p114 = scmp.eq.s32.totalorder %s11, 0
    %p115 = por %p113, %p114
    %p116 = scmp.ne.s32.totalorder %s108, %s110
    %p117 = scmp.eq.s32.totalorder %s16, 1
    %p118 = por %p116, %p117
    %p119 = scmp.ne.s32.totalorder %s110, %s111
    %p120 = scmp.eq.s32.totalorder %s16, 0
    %p121 = por %p119, %p120
    %p122 = scmp.ne.s32.totalorder %s110, %s111
    %p123 = scmp.eq.s32.totalorder %s17, 1
    %p124 = por %p122, %p123
    %p126 = scmp.ne.s32.totalorder %s111, %s125
    %p127 = scmp.eq.s32.totalorder %s17, 0
    %p128 = por %p126, %p127
    %s129 = ssub.s32 %s11, %s18
    %p130 = scmp.eq.s32.totalorder %s129, 0
    %s132 = sadd.s32 %s131, 1
    %s133 = scalar_select %p130, %s131, %s132
    %p136 = pneg %p130
    %p137 = scmp.eq.s32.totalorder %s11, 1
    %p138 = por %p136, %p137
    %p139 = scmp.ne.s32.totalorder %s131, %s134
    %p140 = scmp.eq.s32.totalorder %s11, 0
    %p141 = por %p139, %p140
    %p142 = scmp.ne.s32.totalorder %s131, %s134
    %p143 = scmp.eq.s32.totalorder %s16, 1
    %p144 = por %p142, %p143
    %p145 = scmp.ne.s32.totalorder %s134, %s135
    %p146 = scmp.eq.s32.totalorder %s16, 0
    %p147 = por %p145, %p146
    %p148 = scmp.ne.s32.totalorder %s134, %s135
    %p149 = scmp.eq.s32.totalorder %s17, 1
    %p150 = por %p148, %p149
    %p152 = scmp.ne.s32.totalorder %s135, %s151
    %p153 = scmp.eq.s32.totalorder %s17, 0
    %p154 = por %p152, %p153
    %p155 = scmp.le.s32.totalorder 1, %s11
    %p156 = scmp.lt.s32.totalorder %s11, 3
    %p157 = pnand %p155, %p156
    %p158 = pneg %p157
    // Predicated region
    $region9: #{eucb_forward.1} parent=5 // pred_check
      _
    $region10: #{eucb_forward.1} parent=5 // pred_check_branch
      %160 = sbr.rel (%p157) target = $region12
    $region11: #{eucb_forward.1} parent=5 // pred_region
      %s161 = ssub.s32 %s11, 1
      // Predicated region
      $region13: #{eucb_forward.1} parent=11 // pred_check
        %p162 = pneg %p58
      $region14: #{eucb_forward.1} parent=11 // pred_check_branch
        %164 = sbr.rel (%p162) target = $region16
      $region15: #{eucb_forward.1} parent=11 // pred_region
        _
      $region16: #{eucb_forward.1} parent=11 // pred_fallthru
        _
      // Predicated region
      $region17: #{eucb_forward.1} parent=11 // pred_check
        %p165 = pneg %p79
      $region18: #{eucb_forward.1} parent=11 // pred_check_branch
        %167 = sbr.rel (%p165) target = $region20
      $region19: #{eucb_forward.1} parent=11 // pred_region
        _
      $region20: #{eucb_forward.1} parent=11 // pred_fallthru
        _
      // Predicated region
      $region21: #{eucb_forward.1} parent=11 // pred_check
        %p168 = pneg %p100
      $region22: #{eucb_forward.1} parent=11 // pred_check_branch
        %170 = sbr.rel (%p168) target = $region24
      $region23: #{eucb_forward.1} parent=11 // pred_region
        _
      $region24: #{eucb_forward.1} parent=11 // pred_fallthru
        _
      // Predicated region
      $region25: #{eucb_forward.1} parent=11 // pred_check
        %p171 = pneg %p121
      $region26: #{eucb_forward.1} parent=11 // pred_check_branch
        %173 = sbr.rel (%p171) target = $region28
      $region27: #{eucb_forward.1} parent=11 // pred_region
        _
      $region28: #{eucb_forward.1} parent=11 // pred_fallthru
        _
    $region12: #{eucb_forward.1} parent=5 // pred_fallthru
      _
    %p174 = scmp.lt.s32.totalorder %s11, 2
    // Predicated region
    $region29: #{eucb_forward.1} parent=5 // pred_check
      %p175 = pneg %p174
    $region30: #{eucb_forward.1} parent=5 // pred_check_branch
      %177 = sbr.rel (%p175) target = $region32
    $region31: #{eucb_forward.1} parent=5 // pred_region
      // Predicated region
      $region33: #{eucb_forward.1} parent=31 // pred_check
        %p178 = pneg %p31
      $region34: #{eucb_forward.1} parent=31 // pred_check_branch
        %180 = sbr.rel (%p178) target = $region36
      $region35: #{eucb_forward.1} parent=31 // pred_region
        %p181 = scmp.lt.s32.totalorder %s11, 1
        %s182 = scalar_select %p181, %s11, 1
        %s183 = smul.addr %s182, 8
        %s184 = smul.addr %s183, 8
        %s185 = scalar_lea.vmem %s0, %s184
      $region36: #{eucb_forward.1} parent=31 // pred_fallthru
        _
    $region32: #{eucb_forward.1} parent=5 // pred_fallthru
      _
    %p186 = scmp.le.s32.totalorder 1, %s11
    %p187 = scmp.lt.s32.totalorder %s11, 3
    %p188 = pnand %p186, %p187
    %p189 = pneg %p188
    // Predicated region
    $region37: #{eucb_forward.1} parent=5 // pred_check
      _
    $region38: #{eucb_forward.1} parent=5 // pred_check_branch
      %191 = sbr.rel (%p188) target = $region40
    $region39: #{eucb_forward.1} parent=5 // pred_region
      %s192 = ssub.s32 %s11, 1
      %p193 = scmp.lt.s32.totalorder %s16, 1
      %s194 = scalar_select %p193, %s16, 1
      %s195 = smul.addr %s194, 8
      %s196 = smul.addr %s195, 8
      %s197 = scalar_lea.vmem %s0, %s196
      %p198 = pneg %p37
      %p199 = pneg %p34
      %p200 = pneg %p58
      %p201 = pneg %p55
      %p202 = pneg %p79
      %p203 = pneg %p76
      %p204 = pneg %p100
      %p205 = pneg %p97
      %p206 = pneg %p121
      %p207 = pneg %p118
      %p208 = pneg %p147
      %p209 = pneg %p144
      %p210 = scmp.lt.s32.totalorder %s16, 1
      %s211 = scalar_select %p210, %s16, 1
      %s212 = smul.addr %s211, 16
      %s213 = smul.addr %s212, 8
      %s214 = scalar_lea.vmem %s5, %s213
      %p215 = scmp.lt.s32.totalorder %s16, 1
      %s216 = scalar_select %p215, %s16, 1
      %s217 = smul.addr %s216, 8
      %s218 = smul.addr %s217, 8
      %s219 = scalar_lea.vmem %s0, %s218
      %p220 = scmp.lt.s32.totalorder %s16, 1
      %s221 = scalar_select %p220, %s16, 1
      %s222 = smul.addr %s221, 16
      %s223 = smul.addr %s222, 8
      %s224 = scalar_lea.vmem %s5, %s223
      %v225 = vld [vmem:[%s219] sm:$0xff]
      %v226 = vld [vmem:[%s219 + $0x8] sm:$0xff]
      %s227 = scalar_lea.vmem %s219, 16
      %v228 = vld [vmem:[%s227] sm:$0xff]
      %v229 = vld [vmem:[%s227 + $0x8] sm:$0xff]
      %s230 = scalar_lea.vmem %s219, 32
      %v231 = vld [vmem:[%s230] sm:$0xff]
      %v232 = vld [vmem:[%s230 + $0x8] sm:$0xff]
      %s233 = scalar_lea.vmem %s219, 48
      %v234 = vld [vmem:[%s233] sm:$0xff]
      %v235 = vld [vmem:[%s233 + $0x8] sm:$0xff]
      %238 = vrot.lane.b32.xlu0 %v228, 16
      %v239 = vpop.permute.xlu0 %238
      %240 = vrot.lane.b32.xlu0 %v229, 16
      %v241 = vpop.permute.xlu0 %240
      %246 = vrot.lane.b32.xlu0 %v231, 32
      %v247 = vpop.permute.xlu0 %246
      %248 = vrot.lane.b32.xlu0 %v232, 32
      %v249 = vpop.permute.xlu0 %248
      %254 = vrot.lane.b32.xlu0 %v234, 48
      %v255 = vpop.permute.xlu0 %254
      %256 = vrot.lane.b32.xlu0 %v235, 48
      %v257 = vpop.permute.xlu0 %256
      %vm260 = vcmask 130048
      %v261 = vsel %vm260, %v225, %v239
      %v262 = vsel %vm260, %v226, %v241
      %vm263 = vcmask 261120
      %v264 = vsel %vm263, %v261, %v247
      %v265 = vsel %vm263, %v262, %v249
      %vm266 = vcmask 392192
      %v267 = vsel %vm266, %v264, %v255
      %v268 = vsel %vm266, %v265, %v257
      %vm271 = vcmask 1040384
      %v272 = vrot.slane %v267, 7
      %v273 = vrot.slane %v268, 7
      %v274 = vsel %vm271, %v272, %v273
      %v278 = vsel %vm271, 0.0, %v272
      %v279 = vsel %vm271, %v273, 0.0
      %282 = vrot.lane.b32.xlu0 %v278, 1
      %v283 = vpop.permute.xlu0 %282
      %284 = vrot.lane.b32.xlu0 %v274, 1
      %v285 = vpop.permute.xlu0 %284
      %286 = vrot.lane.b32.xlu0 %v279, 1
      %v287 = vpop.permute.xlu0 %286
      %vm291 = vcmask 7168
      %v292 = vsel %vm291, 0.0, %v283
      %v293 = vsel %vm291, 0.0, %v285
      %v294 = vsel %vm291, 0.0, %v287
      %295 = vrot.lane.b32.xlu0 %v278, 127
      %v296 = vpop.permute.xlu0 %295
      %297 = vrot.lane.b32.xlu0 %v274, 127
      %v298 = vpop.permute.xlu0 %297
      %299 = vrot.lane.b32.xlu0 %v279, 127
      %v300 = vpop.permute.xlu0 %299
      %vm304 = vcmask 515072
      %v305 = vsel %vm304, %v296, 0.0
      %v306 = vsel %vm304, %v298, 0.0
      %v307 = vsel %vm304, %v300, 0.0
      %v308 = vld [vmem:[%s1] sm:$0xff]
      %v309 = vld [vmem:[%s1 + $0x8] sm:$0xff]
      %v310 = vld [vmem:[%s2] sm:$0x1]
      %v312 = vlaneseq
      %v313 = vshrl.u32 %v312, 7
      %v314 = vsub.s32 0, %v313
      %v315 = vrot.slane %v310, %v314
      %v317 = vld [vmem:[%s4] sm:$0x3]
      %v319 = vlaneseq
      %v320 = vshrl.u32 %v319, 7
      %v321 = vsub.s32 0, %v320
      %v322 = vrot.slane %v317, %v321
      %v323 = vlaneseq
      %v324 = vshrl.u32 %v323, 7
      %v325 = vsub.s32 1, %v324
      %v326 = vrot.slane %v317, %v325
      %v329 = vld [vmem:[%s3] sm:$0xff]
      %v330 = vld [vmem:[%s3 + $0x8] sm:$0xff]
      %v331 = vld [vmem:[%s3 + $0x10] sm:$0xff]
      %v332 = vld [vmem:[%s3 + $0x18] sm:$0xff]
      %v333 = vld [vmem:[%s3 + $0x20] sm:$0xff]
      %v334 = vld [vmem:[%s3 + $0x28] sm:$0xff]
      %v335 = vld [vmem:[%s3 + $0x30] sm:$0xff]
      %v336 = vld [vmem:[%s3 + $0x38] sm:$0xff]
      %v337 = vld [vmem:[%s3 + $0x40] sm:$0xff]
      %v338 = vld [vmem:[%s3 + $0x48] sm:$0xff]
      %v339 = vld [vmem:[%s3 + $0x50] sm:$0xff]
      %v340 = vld [vmem:[%s3 + $0x58] sm:$0xff]
      %v341 = vld [vmem:[%s3 + $0x60] sm:$0xff]
      %v342 = vld [vmem:[%s3 + $0x68] sm:$0xff]
      %v343 = vld [vmem:[%s3 + $0x70] sm:$0xff]
      %v344 = vld [vmem:[%s3 + $0x78] sm:$0xff]
      %v345 = vld [vmem:[%s3 + $0x80] sm:$0xff]
      %v346 = vld [vmem:[%s3 + $0x88] sm:$0xff]
      %v347 = vld [vmem:[%s3 + $0x90] sm:$0xff]
      %v348 = vld [vmem:[%s3 + $0x98] sm:$0xff]
      %v349 = vld [vmem:[%s3 + $0xa0] sm:$0xff]
      %v350 = vld [vmem:[%s3 + $0xa8] sm:$0xff]
      %v351 = vld [vmem:[%s3 + $0xb0] sm:$0xff]
      %v352 = vld [vmem:[%s3 + $0xb8] sm:$0xff]
      %v353 = vld [vmem:[%s3 + $0xc0] sm:$0xff]
      %v354 = vld [vmem:[%s3 + $0xc8] sm:$0xff]
      %v355 = vld [vmem:[%s3 + $0xd0] sm:$0xff]
      %v356 = vld [vmem:[%s3 + $0xd8] sm:$0xff]
      %v357 = vld [vmem:[%s3 + $0xe0] sm:$0xff]
      %v358 = vld [vmem:[%s3 + $0xe8] sm:$0xff]
      %v359 = vld [vmem:[%s3 + $0xf0] sm:$0xff]
      %v360 = vld [vmem:[%s3 + $0xf8] sm:$0xff]
      %v361 = vlaneseq
      %v362 = vshrl.u32 %v361, 7
      %v363 = vsub.s32 0, %v362
      %v364 = vrot.slane %v308, %v363
      %v365 = vmul.f32 %v292, %v364
      %v366 = vmul.f32 %v293, %v364
      %v367 = vlaneseq
      %v368 = vshrl.u32 %v367, 7
      %v369 = vsub.s32 1, %v368
      %v370 = vrot.slane %v308, %v369
      %v371 = vmul.f32 %v278, %v370
      %v372 = vmul.f32 %v274, %v370
      %v373 = vadd.f32 %v365, %v371
      %v374 = vadd.f32 %v366, %v372
      %v375 = vlaneseq
      %v376 = vshrl.u32 %v375, 7
      %v377 = vsub.s32 2, %v376
      %v378 = vrot.slane %v308, %v377
      %v379 = vmul.f32 %v292, %v378
      %v380 = vmul.f32 %v293, %v378
      %v381 = vmul.f32 %v294, %v378
      %vm385 = vcmask 1046528
      %v386 = vrot.slane %v379, 1
      %v387 = vrot.slane %v380, 1
      %v388 = vsel %vm385, %v386, %v387
      %v389 = vrot.slane %v381, 1
      %v390 = vsel %vm385, %v387, %v389
      %v393 = vadd.f32 %v373, %v388
      %v394 = vadd.f32 %v374, %v390
      %v395 = vlaneseq
      %v396 = vshrl.u32 %v395, 7
      %v397 = vsub.s32 3, %v396
      %v398 = vrot.slane %v308, %v397
      %v399 = vmul.f32 %v278, %v398
      %v400 = vmul.f32 %v274, %v398
      %v401 = vmul.f32 %v279, %v398
      %v405 = vrot.slane %v399, 1
      %v406 = vrot.slane %v400, 1
      %v407 = vsel %vm385, %v405, %v406
      %v408 = vrot.slane %v401, 1
      %v409 = vsel %vm385, %v406, %v408
      %v412 = vadd.f32 %v393, %v407
      %v413 = vadd.f32 %v394, %v409
      %v414 = vadd.f32 %v412, %v315
      %v415 = vadd.f32 %v413, %v315
      %v416 = vmax.f32 %v414, 0.0
      %v417 = vmax.f32 %v415, 0.0
      %v418 = vlaneseq
      %v419 = vshrl.u32 %v418, 7
      %v420 = vsub.s32 4, %v419
      %v421 = vrot.slane %v308, %v420
      %v422 = vmul.f32 %v278, %v421
      %v423 = vmul.f32 %v274, %v421
      %v424 = vlaneseq
      %v425 = vshrl.u32 %v424, 7
      %v426 = vsub.s32 5, %v425
      %v427 = vrot.slane %v308, %v426
      %v428 = vmul.f32 %v305, %v427
      %v429 = vmul.f32 %v306, %v427
      %v430 = vadd.f32 %v422, %v428
      %v431 = vadd.f32 %v423, %v429
      %v432 = vlaneseq
      %v433 = vshrl.u32 %v432, 7
      %v434 = vsub.s32 6, %v433
      %v435 = vrot.slane %v308, %v434
      %v436 = vmul.f32 %v278, %v435
      %v437 = vmul.f32 %v274, %v435
      %v438 = vmul.f32 %v279, %v435
      %v442 = vrot.slane %v436, 1
      %v443 = vrot.slane %v437, 1
      %v444 = vsel %vm385, %v442, %v443
      %v445 = vrot.slane %v438, 1
      %v446 = vsel %vm385, %v443, %v445
      %v449 = vadd.f32 %v430, %v444
      %v450 = vadd.f32 %v431, %v446
      %v451 = vlaneseq
      %v452 = vshrl.u32 %v451, 7
      %v453 = vsub.s32 7, %v452
      %v454 = vrot.slane %v308, %v453
      %v455 = vmul.f32 %v305, %v454
      %v456 = vmul.f32 %v306, %v454
      %v457 = vmul.f32 %v307, %v454
      %v461 = vrot.slane %v455, 1
      %v462 = vrot.slane %v456, 1
      %v463 = vsel %vm385, %v461, %v462
      %v464 = vrot.slane %v457, 1
      %v465 = vsel %vm385, %v462, %v464
      %v468 = vadd.f32 %v449, %v463
      %v469 = vadd.f32 %v450, %v465
      %v470 = vadd.f32 %v468, %v315
      %v471 = vadd.f32 %v469, %v315
      %v472 = vmax.f32 %v470, 0.0
      %v473 = vmax.f32 %v471, 0.0
      %476 = vrot.lane.b32.xlu0 %v472, 64
      %v477 = vpop.permute.xlu0 %476
      %478 = vrot.lane.b32.xlu0 %v473, 64
      %v479 = vpop.permute.xlu0 %478
      %vm482 = vcmask 523264
      %v483 = vsel %vm482, %v416, %v477
      %v484 = vsel %vm482, %v417, %v479
      %vm485 = vcmask 654336
      %v486 = vsel %vm485, %v483, %v477
      %v487 = vsel %vm485, %v484, %v479
      %vm488 = vcmask 785408
      %v489 = vsel %vm488, %v486, %v477
      %v490 = vsel %vm488, %v487, %v479
      %vm491 = vcmask 916480
      %v492 = vsel %vm491, %v489, %v477
      %v493 = vsel %vm491, %v490, %v479
      %494 = vmatprep.subr.mxu0 %v360
      %495 = vmatpush1.msra.mxu0 %v359
      %496 = vmatprep.subr.mxu0 %v358
      %497 = vmatpush1.msra.mxu0 %v357
      %498 = vmatprep.subr.mxu0 %v356
      %499 = vmatpush1.msra.mxu0 %v355
      %500 = vmatprep.subr.mxu0 %v354
      %501 = vmatpush1.msra.mxu0 %v353
      %502 = vmatprep.subr.mxu0 %v352
      %503 = vmatpush1.msra.mxu0 %v351
      %504 = vmatprep.subr.mxu0 %v350
      %505 = vmatpush1.msra.mxu0 %v349
      %506 = vmatprep.subr.mxu0 %v348
      %507 = vmatpush1.msra.mxu0 %v347
      %508 = vmatprep.subr.mxu0 %v346
      %509 = vmatpush1.msra.mxu0 %v345
      %510 = vmatprep.subr.mxu0 %v344
      %511 = vmatpush1.msra.mxu0 %v343
      %512 = vmatprep.subr.mxu0 %v342
      %513 = vmatpush1.msra.mxu0 %v341
      %514 = vmatprep.subr.mxu0 %v340
      %515 = vmatpush1.msra.mxu0 %v339
      %516 = vmatprep.subr.mxu0 %v338
      %517 = vmatpush1.msra.mxu0 %v337
      %518 = vmatprep.subr.mxu0 %v336
      %519 = vmatpush1.msra.mxu0 %v335
      %520 = vmatprep.subr.mxu0 %v334
      %521 = vmatpush1.msra.mxu0 %v333
      %522 = vmatprep.subr.mxu0 %v332
      %523 = vmatpush1.msra.mxu0 %v331
      %524 = vmatprep.subr.mxu0 %v330
      %525 = vmatpush1.msra.mxu0 %v329
      %526 = vmatprep.subr.mxu0 0.0
      %527 = vmatpush2.msra.mxu0 0.0
      %528 = vmatprep.subr.mxu0 0.0
      %529 = vmatpush2.msra.mxu0 0.0
      %530 = vmatprep.subr.mxu0 0.0
      %531 = vmatpush2.msra.mxu0 0.0
      %532 = vmatprep.subr.mxu0 0.0
      %533 = vmatpush2.msra.mxu0 0.0
      %534 = vmatprep.subr.mxu0 0.0
      %535 = vmatpush2.msra.mxu0 0.0
      %536 = vmatprep.subr.mxu0 0.0
      %537 = vmatpush2.msra.mxu0 0.0
      %538 = vmatprep.subr.mxu0 0.0
      %539 = vmatpush2.msra.mxu0 0.0
      %540 = vmatprep.subr.mxu0 0.0
      %541 = vmatpush2.msra.mxu0 0.0
      %542 = vmatprep.subr.mxu0 0.0
      %543 = vmatpush2.msra.mxu0 0.0
      %544 = vmatprep.subr.mxu0 0.0
      %545 = vmatpush2.msra.mxu0 0.0
      %546 = vmatprep.subr.mxu0 0.0
      %547 = vmatpush2.msra.mxu0 0.0
      %548 = vmatprep.subr.mxu0 0.0
      %549 = vmatpush2.msra.mxu0 0.0
      %550 = vmatprep.subr.mxu0 0.0
      %551 = vmatpush2.msra.mxu0 0.0
      %552 = vmatprep.subr.mxu0 0.0
      %553 = vmatpush2.msra.mxu0 0.0
      %554 = vmatprep.subr.mxu0 0.0
      %555 = vmatpush2.msra.mxu0 0.0
      %556 = vmatprep.subr.mxu0 0.0
      %557 = vmatpush2.msra.mxu0 0.0
      %558 = vmatprep.mubr.f32.mxu0 0.0
      %559 = vmatmul.mubr.f32.gmra.mxu0 %v492
      %v560 = vpop.f32.mrf.mxu0
      %v561 = vadd.f32 %v322, %v560
      %v562 = vpop.f32.mrf.mxu0
      %v563 = vadd.f32 %v326, %v562
      %564 = vmatprep.mubr.f32.mxu0 0.0
      %565 = vmatmul.mubr.f32.gmra.mxu0 %v493
      %v566 = vpop.f32.mrf.mxu0
      %v567 = vadd.f32 %v322, %v566
      %v568 = vpop.f32.mrf.mxu0
      %v569 = vadd.f32 %v326, %v568
      %570 = vdwg.mxu0
      %571 = vst.msk [vmem:[%s224] sm:$0xff] %vm263, %v561
      %572 = vst.msk [vmem:[%s224 + $0x8] sm:$0xff] %vm263, %v567
      %575 = vrot.lane.b32.xlu0 %v561, 96
      %v576 = vpop.permute.xlu0 %575
      %577 = vrot.lane.b32.xlu0 %v567, 96
      %v578 = vpop.permute.xlu0 %577
      %s581 = scalar_lea.vmem %s224, 16
      %582 = vst.msk [vmem:[%s581] sm:$0xff] %vm263, %v576
      %583 = vst.msk [vmem:[%s581 + $0x8] sm:$0xff] %vm263, %v578
      %584 = vrot.lane.b32.xlu0 %v561, 64
      %v585 = vpop.permute.xlu0 %584
      %586 = vrot.lane.b32.xlu0 %v567, 64
      %v587 = vpop.permute.xlu0 %586
      %s590 = scalar_lea.vmem %s224, 32
      %591 = vst.msk [vmem:[%s590] sm:$0xff] %vm263, %v585
      %592 = vst.msk [vmem:[%s590 + $0x8] sm:$0xff] %vm263, %v587
      %593 = vrot.lane.b32.xlu0 %v561, 32
      %v594 = vpop.permute.xlu0 %593
      %595 = vrot.lane.b32.xlu0 %v567, 32
      %v596 = vpop.permute.xlu0 %595
      %s599 = scalar_lea.vmem %s224, 48
      %600 = vst.msk [vmem:[%s599] sm:$0xff] %vm263, %v594
      %601 = vst.msk [vmem:[%s599 + $0x8] sm:$0xff] %vm263, %v596
      %s602 = scalar_lea.vmem %s224, 64
      %603 = vst.msk [vmem:[%s602] sm:$0xff] %vm263, %v563
      %604 = vst.msk [vmem:[%s602 + $0x8] sm:$0xff] %vm263, %v569
      %607 = vrot.lane.b32.xlu0 %v563, 96
      %v608 = vpop.permute.xlu0 %607
      %609 = vrot.lane.b32.xlu0 %v569, 96
      %v610 = vpop.permute.xlu0 %609
      %s613 = scalar_lea.vmem %s224, 80
      %614 = vst.msk [vmem:[%s613] sm:$0xff] %vm263, %v608
      %615 = vst.msk [vmem:[%s613 + $0x8] sm:$0xff] %vm263, %v610
      %616 = vrot.lane.b32.xlu0 %v563, 64
      %v617 = vpop.permute.xlu0 %616
      %618 = vrot.lane.b32.xlu0 %v569, 64
      %v619 = vpop.permute.xlu0 %618
      %s622 = scalar_lea.vmem %s224, 96
      %623 = vst.msk [vmem:[%s622] sm:$0xff] %vm263, %v617
      %624 = vst.msk [vmem:[%s622 + $0x8] sm:$0xff] %vm263, %v619
      %625 = vrot.lane.b32.xlu0 %v563, 32
      %v626 = vpop.permute.xlu0 %625
      %627 = vrot.lane.b32.xlu0 %v569, 32
      %v628 = vpop.permute.xlu0 %627
      %s631 = scalar_lea.vmem %s224, 112
      %632 = vst.msk [vmem:[%s631] sm:$0xff] %vm263, %v626
      %633 = vst.msk [vmem:[%s631 + $0x8] sm:$0xff] %vm263, %v628
      %v634 = vlaneseq
      %v635 = vshrl.u32 %v634, 7
      %v636 = vsub.s32 0, %v635
      %v637 = vrot.slane %v309, %v636
      %v638 = vmul.f32 %v292, %v637
      %v639 = vmul.f32 %v293, %v637
      %v640 = vmul.f32 %v294, %v637
      %v641 = vlaneseq
      %v642 = vshrl.u32 %v641, 7
      %v643 = vsub.s32 1, %v642
      %v644 = vrot.slane %v309, %v643
      %v645 = vmul.f32 %v278, %v644
      %v646 = vmul.f32 %v274, %v644
      %v647 = vmul.f32 %v279, %v644
      %v648 = vadd.f32 %v638, %v645
      %v649 = vadd.f32 %v639, %v646
      %v650 = vadd.f32 %v640, %v647
      %v651 = vlaneseq
      %v652 = vshrl.u32 %v651, 7
      %v653 = vsub.s32 2, %v652
      %v654 = vrot.slane %v309, %v653
      %v655 = vmul.f32 %v292, %v654
      %v656 = vmul.f32 %v293, %v654
      %v657 = vmul.f32 %v294, %v654
      %v661 = vrot.slane %v655, 1
      %v662 = vrot.slane %v656, 1
      %v663 = vsel %vm385, %v661, %v662
      %v664 = vrot.slane %v657, 1
      %v665 = vsel %vm385, %v662, %v664
      %v669 = vadd.f32 %v648, %v663
      %v670 = vadd.f32 %v649, %v665
      %v671 = vadd.f32 %v650, %v664
      %v672 = vlaneseq
      %v673 = vshrl.u32 %v672, 7
      %v674 = vsub.s32 3, %v673
      %v675 = vrot.slane %v309, %v674
      %v676 = vmul.f32 %v278, %v675
      %v677 = vmul.f32 %v274, %v675
      %v678 = vmul.f32 %v279, %v675
      %v682 = vrot.slane %v676, 1
      %v683 = vrot.slane %v677, 1
      %v684 = vsel %vm385, %v682, %v683
      %v685 = vrot.slane %v678, 1
      %v686 = vsel %vm385, %v683, %v685
      %v690 = vadd.f32 %v669, %v684
      %v691 = vadd.f32 %v670, %v686
      %v692 = vadd.f32 %v671, %v685
      %v693 = vadd.f32 %v690, %v315
      %v694 = vadd.f32 %v691, %v315
      %v695 = vadd.f32 %v692, %v315
      %v696 = vmax.f32 %v693, 0.0
      %v697 = vmax.f32 %v694, 0.0
      %v698 = vmax.f32 %v695, 0.0
      %v699 = vlaneseq
      %v700 = vshrl.u32 %v699, 7
      %v701 = vsub.s32 4, %v700
      %v702 = vrot.slane %v309, %v701
      %v703 = vmul.f32 %v278, %v702
      %v704 = vmul.f32 %v274, %v702
      %v705 = vmul.f32 %v279, %v702
      %v706 = vlaneseq
      %v707 = vshrl.u32 %v706, 7
      %v708 = vsub.s32 5, %v707
      %v709 = vrot.slane %v309, %v708
      %v710 = vmul.f32 %v305, %v709
      %v711 = vmul.f32 %v306, %v709
      %v712 = vmul.f32 %v307, %v709
      %v713 = vadd.f32 %v703, %v710
      %v714 = vadd.f32 %v704, %v711
      %v715 = vadd.f32 %v705, %v712
      %v716 = vlaneseq
      %v717 = vshrl.u32 %v716, 7
      %v718 = vsub.s32 6, %v717
      %v719 = vrot.slane %v309, %v718
      %v720 = vmul.f32 %v278, %v719
      %v721 = vmul.f32 %v274, %v719
      %v722 = vmul.f32 %v279, %v719
      %v726 = vrot.slane %v720, 1
      %v727 = vrot.slane %v721, 1
      %v728 = vsel %vm385, %v726, %v727
      %v729 = vrot.slane %v722, 1
      %v730 = vsel %vm385, %v727, %v729
      %v734 = vadd.f32 %v713, %v728
      %v735 = vadd.f32 %v714, %v730
      %v736 = vadd.f32 %v715, %v729
      %v737 = vlaneseq
      %v738 = vshrl.u32 %v737, 7
      %v739 = vsub.s32 7, %v738
      %v740 = vrot.slane %v309, %v739
      %v741 = vmul.f32 %v305, %v740
      %v742 = vmul.f32 %v306, %v740
      %v743 = vmul.f32 %v307, %v740
      %v747 = vrot.slane %v741, 1
      %v748 = vrot.slane %v742, 1
      %v749 = vsel %vm385, %v747, %v748
      %v750 = vrot.slane %v743, 1
      %v751 = vsel %vm385, %v748, %v750
      %v755 = vadd.f32 %v734, %v749
      %v756 = vadd.f32 %v735, %v751
      %v757 = vadd.f32 %v736, %v750
      %v758 = vadd.f32 %v755, %v315
      %v759 = vadd.f32 %v756, %v315
      %v760 = vadd.f32 %v757, %v315
      %v761 = vmax.f32 %v758, 0.0
      %v762 = vmax.f32 %v759, 0.0
      %v763 = vmax.f32 %v760, 0.0
      %767 = vrot.lane.b32.xlu0 %v761, 64
      %v768 = vpop.permute.xlu0 %767
      %769 = vrot.lane.b32.xlu0 %v762, 64
      %v770 = vpop.permute.xlu0 %769
      %771 = vrot.lane.b32.xlu0 %v763, 64
      %v772 = vpop.permute.xlu0 %771
      %v776 = vsel %vm482, %v696, %v768
      %v777 = vsel %vm482, %v697, %v770
      %v778 = vsel %vm482, %v698, %v772
      %v779 = vsel %vm485, %v776, %v768
      %v780 = vsel %vm485, %v777, %v770
      %v781 = vsel %vm485, %v778, %v772
      %v782 = vsel %vm488, %v779, %v768
      %v783 = vsel %vm488, %v780, %v770
      %v784 = vsel %vm488, %v781, %v772
      %v785 = vsel %vm491, %v782, %v768
      %v786 = vsel %vm491, %v783, %v770
      %v787 = vsel %vm491, %v784, %v772
      %v791 = vrot.slane %v785, 1
      %v792 = vrot.slane %v786, 1
      %v793 = vsel %vm385, %v791, %v792
      %v794 = vrot.slane %v787, 1
      %v795 = vsel %vm385, %v792, %v794
      %798 = vmatprep.subr.mxu0 %v360
      %799 = vmatpush1.msra.mxu0 %v359
      %800 = vmatprep.subr.mxu0 %v358
      %801 = vmatpush1.msra.mxu0 %v357
      %802 = vmatprep.subr.mxu0 %v356
      %803 = vmatpush1.msra.mxu0 %v355
      %804 = vmatprep.subr.mxu0 %v354
      %805 = vmatpush1.msra.mxu0 %v353
      %806 = vmatprep.subr.mxu0 %v352
      %807 = vmatpush1.msra.mxu0 %v351
      %808 = vmatprep.subr.mxu0 %v350
      %809 = vmatpush1.msra.mxu0 %v349
      %810 = vmatprep.subr.mxu0 %v348
      %811 = vmatpush1.msra.mxu0 %v347
      %812 = vmatprep.subr.mxu0 %v346
      %813 = vmatpush1.msra.mxu0 %v345
      %814 = vmatprep.subr.mxu0 %v344
      %815 = vmatpush1.msra.mxu0 %v343
      %816 = vmatprep.subr.mxu0 %v342
      %817 = vmatpush1.msra.mxu0 %v341
      %818 = vmatprep.subr.mxu0 %v340
      %819 = vmatpush1.msra.mxu0 %v339
      %820 = vmatprep.subr.mxu0 %v338
      %821 = vmatpush1.msra.mxu0 %v337
      %822 = vmatprep.subr.mxu0 %v336
      %823 = vmatpush1.msra.mxu0 %v335
      %824 = vmatprep.subr.mxu0 %v334
      %825 = vmatpush1.msra.mxu0 %v333
      %826 = vmatprep.subr.mxu0 %v332
      %827 = vmatpush1.msra.mxu0 %v331
      %828 = vmatprep.subr.mxu0 %v330
      %829 = vmatpush1.msra.mxu0 %v329
      %830 = vmatprep.subr.mxu0 0.0
      %831 = vmatpush2.msra.mxu0 0.0
      %832 = vmatprep.subr.mxu0 0.0
      %833 = vmatpush2.msra.mxu0 0.0
      %834 = vmatprep.subr.mxu0 0.0
      %835 = vmatpush2.msra.mxu0 0.0
      %836 = vmatprep.subr.mxu0 0.0
      %837 = vmatpush2.msra.mxu0 0.0
      %838 = vmatprep.subr.mxu0 0.0
      %839 = vmatpush2.msra.mxu0 0.0
      %840 = vmatprep.subr.mxu0 0.0
      %841 = vmatpush2.msra.mxu0 0.0
      %842 = vmatprep.subr.mxu0 0.0
      %843 = vmatpush2.msra.mxu0 0.0
      %844 = vmatprep.subr.mxu0 0.0
      %845 = vmatpush2.msra.mxu0 0.0
      %846 = vmatprep.subr.mxu0 0.0
      %847 = vmatpush2.msra.mxu0 0.0
      %848 = vmatprep.subr.mxu0 0.0
      %849 = vmatpush2.msra.mxu0 0.0
      %850 = vmatprep.subr.mxu0 0.0
      %851 = vmatpush2.msra.mxu0 0.0
      %852 = vmatprep.subr.mxu0 0.0
      %853 = vmatpush2.msra.mxu0 0.0
      %854 = vmatprep.subr.mxu0 0.0
      %855 = vmatpush2.msra.mxu0 0.0
      %856 = vmatprep.subr.mxu0 0.0
      %857 = vmatpush2.msra.mxu0 0.0
      %858 = vmatprep.subr.mxu0 0.0
      %859 = vmatpush2.msra.mxu0 0.0
      %860 = vmatprep.subr.mxu0 0.0
      %861 = vmatpush2.msra.mxu0 0.0
      %862 = vmatprep.mubr.f32.mxu0 0.0
      %863 = vmatmul.mubr.f32.gmra.mxu0 %v793
      %v864 = vpop.f32.mrf.mxu0
      %v865 = vadd.f32 %v322, %v864
      %v866 = vpop.f32.mrf.mxu0
      %v867 = vadd.f32 %v326, %v866
      %868 = vmatprep.mubr.f32.mxu0 0.0
      %869 = vmatmul.mubr.f32.gmra.mxu0 %v795
      %v870 = vpop.f32.mrf.mxu0
      %v871 = vadd.f32 %v322, %v870
      %v872 = vpop.f32.mrf.mxu0
      %v873 = vadd.f32 %v326, %v872
      %874 = vdwg.mxu0
      %877 = vrot.lane.b32.xlu0 %v865, 32
      %v878 = vpop.permute.xlu0 %877
      %879 = vrot.lane.b32.xlu0 %v871, 32
      %v880 = vpop.permute.xlu0 %879
      %vm883 = vcmask 523520
      %884 = vst.msk [vmem:[%s224] sm:$0xff] %vm883, %v878
      %885 = vst.msk [vmem:[%s224 + $0x8] sm:$0xff] %vm883, %v880
      %886 = vst.msk [vmem:[%s581] sm:$0xff] %vm883, %v865
      %887 = vst.msk [vmem:[%s581 + $0x8] sm:$0xff] %vm883, %v871
      %888 = vrot.lane.b32.xlu0 %v865, 96
      %v889 = vpop.permute.xlu0 %888
      %890 = vrot.lane.b32.xlu0 %v871, 96
      %v891 = vpop.permute.xlu0 %890
      %894 = vst.msk [vmem:[%s590] sm:$0xff] %vm883, %v889
      %895 = vst.msk [vmem:[%s590 + $0x8] sm:$0xff] %vm883, %v891
      %896 = vrot.lane.b32.xlu0 %v865, 64
      %v897 = vpop.permute.xlu0 %896
      %898 = vrot.lane.b32.xlu0 %v871, 64
      %v899 = vpop.permute.xlu0 %898
      %902 = vst.msk [vmem:[%s599] sm:$0xff] %vm883, %v897
      %903 = vst.msk [vmem:[%s599 + $0x8] sm:$0xff] %vm883, %v899
      %906 = vrot.lane.b32.xlu0 %v867, 32
      %v907 = vpop.permute.xlu0 %906
      %908 = vrot.lane.b32.xlu0 %v873, 32
      %v909 = vpop.permute.xlu0 %908
      %912 = vst.msk [vmem:[%s602] sm:$0xff] %vm883, %v907
      %913 = vst.msk [vmem:[%s602 + $0x8] sm:$0xff] %vm883, %v909
      %914 = vst.msk [vmem:[%s613] sm:$0xff] %vm883, %v867
      %915 = vst.msk [vmem:[%s613 + $0x8] sm:$0xff] %vm883, %v873
      %916 = vrot.lane.b32.xlu0 %v867, 96
      %v917 = vpop.permute.xlu0 %916
      %918 = vrot.lane.b32.xlu0 %v873, 96
      %v919 = vpop.permute.xlu0 %918
      %922 = vst.msk [vmem:[%s622] sm:$0xff] %vm883, %v917
      %923 = vst.msk [vmem:[%s622 + $0x8] sm:$0xff] %vm883, %v919
      %924 = vrot.lane.b32.xlu0 %v867, 64
      %v925 = vpop.permute.xlu0 %924
      %926 = vrot.lane.b32.xlu0 %v873, 64
      %v927 = vpop.permute.xlu0 %926
      %930 = vst.msk [vmem:[%s631] sm:$0xff] %vm883, %v925
      %931 = vst.msk [vmem:[%s631 + $0x8] sm:$0xff] %vm883, %v927
      %p932 = scmp.lt.s32.totalorder %s16, 1
      %s933 = scalar_select %p932, %s16, 1
      %s934 = smul.addr %s933, 16
      %s935 = smul.addr %s934, 8
      %s936 = scalar_lea.vmem %s5, %s935
      // Predicated region
      $region41: #{eucb_forward.1} parent=39 // pred_check
        %p937 = pneg %p144
      $region42: #{eucb_forward.1} parent=39 // pred_check_branch
        %939 = sbr.rel (%p937) target = $region44
      $region43: #{eucb_forward.1} parent=39 // pred_region
        _
      $region44: #{eucb_forward.1} parent=39 // pred_fallthru
        _
    $region40: #{eucb_forward.1} parent=5 // pred_fallthru
      _
    %p940 = scmp.le.s32.totalorder 2, %s11
    // Predicated region
    $region45: #{eucb_forward.1} parent=5 // pred_check
      %p941 = pneg %p940
    $region46: #{eucb_forward.1} parent=5 // pred_check_branch
      %943 = sbr.rel (%p941) target = $region48
    $region47: #{eucb_forward.1} parent=5 // pred_region
      %s944 = ssub.s32 %s11, 2
      // Predicated region
      $region49: #{eucb_forward.1} parent=47 // pred_check
        %p945 = pneg %p150
      $region50: #{eucb_forward.1} parent=47 // pred_check_branch
        %947 = sbr.rel (%p945) target = $region52
      $region51: #{eucb_forward.1} parent=47 // pred_region
        %p948 = scmp.lt.s32.totalorder %s17, 1
        %s949 = scalar_select %p948, %s17, 1
        %s950 = smul.addr %s949, 16
        %s951 = smul.addr %s950, 8
        %s952 = scalar_lea.vmem %s5, %s951
      $region52: #{eucb_forward.1} parent=47 // pred_fallthru
        _
    $region48: #{eucb_forward.1} parent=5 // pred_fallthru
      _
  $region6: #{eucb_forward.1} parent=0 // loop_footer
    %s15 = sadd.s32 1, %s11
  $region7: #{eucb_forward.1} parent=0 // loop_footer_branch
    %10 = sbr.rel target = $region3
  $region8: #{eucb_forward.1} parent=0 // loop_exit
    _

</llo_original>
